<compile_context>
chip_gen: v7x
topology: tpu7x:2x2x1
jax: 0.10.0
libtpu: 0.0.40
codegen_flags: <defaults>
</compile_context>

<pallas_src>
import functools

import jax
import jax.numpy as jnp
import numpy as np
from jax.experimental import pallas as pl
from jax.experimental.pallas import tpu as pltpu

NUM_SELECTED = 24  # torch.arange(24) joint selection in the module


def _prep_camera_vectors(translation, estimate_t):
    # 12-byte casts are free; keeps the SMEM refs 32-bit (avoids sub-32-bit SMEM reads).
    if translation.dtype != jnp.float32:
        translation = translation.astype(jnp.float32)
    if estimate_t.dtype != jnp.float32:
        estimate_t = estimate_t.astype(jnp.float32)
    return translation, estimate_t


# ----------------------------------------------------------------------------
# Single-sample kernel (matches the module's forward exactly).
# ----------------------------------------------------------------------------
def _camera_loss_kernel(model_ref, gt_ref, trans_ref, est_ref, out_ref, *,
                        reproj_w, depth_w2):
    # model_ref / gt_ref: (J, D) in VMEM.  Static slice = first-24-joint selection
    # at compile time (no iota/select, no masking on the VPU).  In-kernel cast so
    # bf16/f16 inputs ride the DMA at half width and convert on the VPU.
    m = model_ref[:NUM_SELECTED, :].astype(jnp.float32)
    g = gt_ref[:NUM_SELECTED, :].astype(jnp.float32)
    diff = m - g
    reprojection_loss = reproj_w * jnp.sum(diff * diff)

    dz = trans_ref[2] - est_ref[2]            # scalar SMEM reads
    depth_loss = depth_w2 * (dz * dz)

    out_ref[0] = reprojection_loss + depth_loss  # scalar result straight to SMEM


def camera_loss(model_joints, gt_joints, translation, estimate_t,
                reprojection_weight=0.01, depth_weight=100.0):
    """model_joints / gt_joints: (J, D); translation / estimate_t: (3,)."""
    if model_joints.ndim != 2:
        raise ValueError(
            f"camera_loss expects unbatched (J, D) joints, got {model_joints.shape}; "
            "use camera_loss_batched for (B, J, D) inputs.")
    J, D = model_joints.shape
    if J < NUM_SELECTED:
        raise ValueError(f"need at least {NUM_SELECTED} joints, got {J}")
    translation, estimate_t = _prep_camera_vectors(translation, estimate_t)

    kernel = functools.partial(
        _camera_loss_kernel,
        reproj_w=float(reprojection_weight),
        depth_w2=float(depth_weight) ** 2)

    vmem = pl.BlockSpec(memory_space=pltpu.MemorySpace.VMEM)
    smem = pl.BlockSpec(memory_space=pltpu.MemorySpace.SMEM)
    itemsize = jnp.dtype(model_joints.dtype).itemsize
    cost = pl.CostEstimate(
        flops=6 * NUM_SELECTED * D,
        transcendentals=0,
        bytes_accessed=2 * J * D * itemsize + 2 * 3 * 4 + 4)

    out = pl.pallas_call(
        kernel,
        out_shape=jax.ShapeDtypeStruct((1,), jnp.float32),
        in_specs=[vmem, vmem, smem, smem],
        out_specs=smem,
        cost_estimate=cost,
    )(model_joints, gt_joints, translation, estimate_t)
    return out[0]


# ----------------------------------------------------------------------------
# Batched kernel: grid=(B,), per-sample (1, 24, D) joint blocks, per-sample loss.
# Amortizes the launch/DMA-issue overhead over the batch; batch axis is
# "parallel" so v7x shards grid steps across its two TensorCores.
# ----------------------------------------------------------------------------
def _camera_loss_batched_kernel(model_ref, gt_ref, trans_ref, est_ref, out_ref, *,
                                reproj_w, depth_w2):
    b = pl.program_id(0)
    m = model_ref[...].astype(jnp.float32)    # (1, 24, D) block
    g = gt_ref[...].astype(jnp.float32)
    diff = m - g
    reprojection_loss = reproj_w * jnp.sum(diff * diff)

    dz = trans_ref[b, 2] - est_ref[2]          # scalar SMEM reads
    depth_loss = depth_w2 * (dz * dz)

    out_ref[...] = jnp.full((1, 1, 1), reprojection_loss + depth_loss, jnp.float32)


def camera_loss_batched(model_joints, gt_joints, translation, estimate_t,
                        reprojection_weight=0.01, depth_weight=100.0):
    """model_joints / gt_joints: (B, J, D); translation: (B, 3); estimate_t: (3,).

    Returns per-sample losses of shape (B,)."""
    if model_joints.ndim != 3:
        raise ValueError(f"expected (B, J, D) joints, got {model_joints.shape}")
    B, J, D = model_joints.shape
    if J < NUM_SELECTED:
        raise ValueError(f"need at least {NUM_SELECTED} joints, got {J}")
    translation, estimate_t = _prep_camera_vectors(translation, estimate_t)

    kernel = functools.partial(
        _camera_loss_batched_kernel,
        reproj_w=float(reprojection_weight),
        depth_w2=float(depth_weight) ** 2)

    smem = pl.BlockSpec(memory_space=pltpu.MemorySpace.SMEM)
    # (1, 24, D) blocks: 24 divisible by 8, D equals the full last dim -> valid,
    # and the DMA only moves the 24 selected rows per sample.
    joint_spec = pl.BlockSpec((1, NUM_SELECTED, D), lambda b: (b, 0, 0))
    itemsize = jnp.dtype(model_joints.dtype).itemsize
    cost = pl.CostEstimate(
        flops=B * 6 * NUM_SELECTED * D,
        transcendentals=0,
        bytes_accessed=2 * B * NUM_SELECTED * D * itemsize + B * 12 + 12 + B * 4)

    out = pl.pallas_call(
        kernel,
        out_shape=jax.ShapeDtypeStruct((B, 1, 1), jnp.float32),
        grid=(B,),
        in_specs=[joint_spec, joint_spec, smem, smem],
        out_specs=pl.BlockSpec((1, 1, 1), lambda b: (b, 0, 0)),
        compiler_params=pltpu.CompilerParams(
            dimension_semantics=("parallel",)),
        cost_estimate=cost,
    )(model_joints, gt_joints, translation, estimate_t)
    return out[:, 0, 0]


# ----------------------------------------------------------------------------
# Pure-JAX reference (mirrors the PyTorch forward).
# ----------------------------------------------------------------------------
def _reference(model_joints, gt_joints, translation, estimate_t,
               reprojection_weight, depth_weight):
    reproj = reprojection_weight * jnp.sum(
        (model_joints[:NUM_SELECTED, :] - gt_joints[:NUM_SELECTED, :]) ** 2)
    depth = depth_weight ** 2 * jnp.sum((translation[2] - estimate_t[2]) ** 2)
    return reproj + depth


if __name__ == "__main__":
    key = jax.random.PRNGKey(0)
    k1, k2, k3, k4, k5, k6 = jax.random.split(key, 6)

    J, D, B = 32, 2, 3                         # OpenPose-style 2D keypoints
    reprojection_weight = 0.01
    depth_weight = 100.0

    # --- single sample (module semantics) ---
    model_joints = jax.random.uniform(k1, (J, D), jnp.float32) * 200.0
    gt_joints = jax.random.uniform(k2, (J, D), jnp.float32) * 200.0
    translation = jnp.array([0.03, -0.05, 5.3], jnp.float32) \
        + jax.random.normal(k3, (3,), jnp.float32) * 0.1     # camera.translation
    estimate_t = jnp.array([0.0, 0.0, 5.5], jnp.float32)

    loss = camera_loss(model_joints, gt_joints, translation, estimate_t,
                       reprojection_weight, depth_weight)
    loss = jax.block_until_ready(loss)
    ref = _reference(model_joints, gt_joints, translation, estimate_t,
                     reprojection_weight, depth_weight)
    np.testing.assert_allclose(np.asarray(loss), np.asarray(ref),
                               rtol=1e-4, atol=1e-2)

    # --- batched variant (amortized launch overhead, parallel batch axis) ---
    model_b = jax.random.uniform(k4, (B, J, D), jnp.float32) * 200.0
    gt_b = jax.random.uniform(k5, (B, J, D), jnp.float32) * 200.0
    trans_b = jnp.array([[0.0, 0.0, 5.2],
                         [0.1, -0.1, 4.8],
                         [-0.05, 0.02, 5.6]], jnp.float32) \
        + jax.random.normal(k6, (B, 3), jnp.float32) * 0.1

    losses_b = camera_loss_batched(model_b, gt_b, trans_b, estimate_t,
                                   reprojection_weight, depth_weight)
    losses_b = jax.block_until_ready(losses_b)
    ref_b = jnp.stack([
        _reference(model_b[i], gt_b[i], trans_b[i], estimate_t,
                   reprojection_weight, depth_weight) for i in range(B)])
    np.testing.assert_allclose(np.asarray(losses_b), np.asarray(ref_b),
                               rtol=1e-4, atol=1e-2)

    print("KERNEL_OK")
</pallas_src>

<mosaic_0001>
module attributes {stable_mosaic.version = 11 : i64} {
  func.func @_camera_loss_kernel(%arg0: memref<32x2xf32, #tpu.memory_space<vmem>>, %arg1: memref<32x2xf32, #tpu.memory_space<vmem>>, %arg2: memref<3xf32, #tpu.memory_space<smem>>, %arg3: memref<3xf32, #tpu.memory_space<smem>>, %arg4: memref<1xf32, #tpu.memory_space<smem>>) attributes {dimension_semantics = [], scalar_prefetch = 0 : i64, scratch_operands = 0 : i64, tpu.core_type = #tpu.core_type<tc>} {
    %c0 = arith.constant 0 : index
    %c0_0 = arith.constant 0 : index
    %0 = vector.load %arg0[%c0, %c0_0] : memref<32x2xf32, #tpu.memory_space<vmem>>, vector<24x2xf32>
    %c0_1 = arith.constant 0 : index
    %c0_2 = arith.constant 0 : index
    %1 = vector.load %arg1[%c0_1, %c0_2] : memref<32x2xf32, #tpu.memory_space<vmem>>, vector<24x2xf32>
    %2 = arith.subf %0, %1 : vector<24x2xf32>
    %3 = arith.mulf %2, %2 : vector<24x2xf32>
    %4 = vector.shape_cast %3 : vector<24x2xf32> to vector<1x24x2xf32>
    %cst = arith.constant dense<0.000000e+00> : vector<1xf32>
    %5 = vector.multi_reduction <add>, %4, %cst [1, 2] : vector<1x24x2xf32> to vector<1xf32>
    %6 = vector.shape_cast %5 : vector<1xf32> to vector<1x1x1xf32>
    %7 = vector.extract %6[0, 0, 0] : f32 from vector<1x1x1xf32>
    %cst_3 = arith.constant 0.00999999977 : f32
    %8 = arith.mulf %cst_3, %7 : f32
    %c2 = arith.constant 2 : index
    %9 = memref.load %arg2[%c2] : memref<3xf32, #tpu.memory_space<smem>>
    %c2_4 = arith.constant 2 : index
    %10 = memref.load %arg3[%c2_4] : memref<3xf32, #tpu.memory_space<smem>>
    %11 = arith.subf %9, %10 : f32
    %12 = arith.mulf %11, %11 : f32
    %cst_5 = arith.constant 1.000000e+04 : f32
    %13 = arith.mulf %cst_5, %12 : f32
    %14 = arith.addf %8, %13 : f32
    %c0_6 = arith.constant 0 : index
    %15 = memref.load %arg4[%c0_6] : memref<1xf32, #tpu.memory_space<smem>>
    memref.store %14, %arg4[%c0_6] : memref<1xf32, #tpu.memory_space<smem>>
    return
  }
}

</mosaic_0001>

<llo_original>
// kernel: tpu_custom_call.1
$region0: #{tpu_custom_call.1}
  #allocation0 [shape = 'u32[]', space=smem, size = 0x4, offset = 0x4, fixed_abs, tag = 'smem constant byte address 0x4 - core index']
  #allocation1 [shape = 'u32[144,128]{1,0:T(1,128)}', space=vmem, size = 0x12000, scoped, tag = 'internal scratch']
  %s0 = inlined_call_operand.vmem [shape: f32[32,2], index: 0, kind: input, shape index: {}]
  %s1 = inlined_call_operand.vmem [shape: f32[32,2], index: 1, kind: input, shape index: {}]
  %s2 = inlined_call_operand.vmem [shape: f32[3], index: 2, kind: input, shape index: {}]
  %s3 = inlined_call_operand.vmem [shape: f32[3], index: 3, kind: input, shape index: {}]
  %s4 = inlined_call_operand.hbm [shape: f32[1], index: 4, kind: output, shape index: {}]
  %s5 = sld [smem:[#allocation0]]
  $region34: #{tpu_custom_call.1} parent=0
    _
  %s7 = ssub.s32 1, %s5
  %s8 = scalar_select 0, %s7, %s5
  $region1: #{tpu_custom_call.1} parent=0
    #allocation2 [shape = 'u8[512]{0}', space=smem, size = 0x200, scoped, tag = 'input window, operand 2, single buffered']
    #allocation3 [shape = 's32[1]{0}', space=sflag, size = 0x4, scoped, tag = 'scoped memory for tpu_custom_call.1']
    #allocation4 [shape = 's32[1]{0}', space=sflag, size = 0x4, scoped, tag = 'scoped memory for tpu_custom_call.1']
    #allocation5 [shape = 'u8[512]{0}', space=smem, size = 0x200, scoped, tag = 'input window, operand 3, single buffered']
    #allocation6 [shape = 's32[1]{0}', space=sflag, size = 0x4, scoped, tag = 'scoped memory for tpu_custom_call.1']
    #allocation7 [shape = 'u8[512]{0}', space=smem, size = 0x200, scoped, tag = 'output window, operand 0, single buffered']
    %9 = vsyncpa [#allocation4], 0
    %10 = vsyncpa [#allocation6], 0
    %11 = vsyncpa [#allocation3], 0
    // Predicated region
    $region2: #{tpu_custom_call.1} parent=1 // pred_check
      _
    $region3: #{tpu_custom_call.1} parent=1 // pred_check_branch
      %13 = sbr.rel (0) target = $region5
    $region4: #{tpu_custom_call.1} parent=1 // pred_region
      _
    $region5: #{tpu_custom_call.1} parent=1 // pred_fallthru
      _
    // Predicated region
    $region6: #{tpu_custom_call.1} parent=1 // pred_check
      _
    $region7: #{tpu_custom_call.1} parent=1 // pred_check_branch
      %15 = sbr.rel (0) target = $region9
    $region8: #{tpu_custom_call.1} parent=1 // pred_region
      _
    $region9: #{tpu_custom_call.1} parent=1 // pred_fallthru
      _
    // Predicated region
    $region10: #{tpu_custom_call.1} parent=1 // pred_check
      _
    $region11: #{tpu_custom_call.1} parent=1 // pred_check_branch
      %17 = sbr.rel (0) target = $region13
    $region12: #{tpu_custom_call.1} parent=1 // pred_region
      %s19 = ssub.s32 16, 16
      %20 = vsyncadd [#allocation4], %s19
      %s22 = sshll.u32 %s2, 4
      %s23 = int_to_ptr.vmem [resolvable:$true] %s22
      %25 = dma.vmem_to_smem %s23, 16, [#allocation2], [#allocation4]
    $region13: #{tpu_custom_call.1} parent=1 // pred_fallthru
      _
    // Predicated region
    $region14: #{tpu_custom_call.1} parent=1 // pred_check
      _
    $region15: #{tpu_custom_call.1} parent=1 // pred_check_branch
      %27 = sbr.rel (0) target = $region17
    $region16: #{tpu_custom_call.1} parent=1 // pred_region
      %s29 = ssub.s32 16, 16
      %30 = vsyncadd [#allocation6], %s29
      %s32 = sshll.u32 %s3, 4
      %s33 = int_to_ptr.vmem [resolvable:$true] %s32
      %35 = dma.vmem_to_smem %s33, 16, [#allocation5], [#allocation6]
    $region17: #{tpu_custom_call.1} parent=1 // pred_fallthru
      _
    // Predicated region
    $region18: #{tpu_custom_call.1} parent=1 // pred_check
      _
    $region19: #{tpu_custom_call.1} parent=1 // pred_check_branch
      %37 = sbr.rel (0) target = $region21
    $region20: #{tpu_custom_call.1} parent=1 // pred_region
      %38 = dma.done [#allocation4], 16
    $region21: #{tpu_custom_call.1} parent=1 // pred_fallthru
      _
    // Predicated region
    $region22: #{tpu_custom_call.1} parent=1 // pred_check
      _
    $region23: #{tpu_custom_call.1} parent=1 // pred_check_branch
      %40 = sbr.rel (0) target = $region25
    $region24: #{tpu_custom_call.1} parent=1 // pred_region
      %41 = dma.done [#allocation6], 16
    $region25: #{tpu_custom_call.1} parent=1 // pred_fallthru
      _
    %42 = sfence
    %v43 = vld [vmem:[%s0] sm:$0xff]
    %v44 = vld [vmem:[%s0 + $0x8] sm:$0xff]
    %v45 = vld [vmem:[%s0 + $0x10] sm:$0xff]
    %v46 = vld [vmem:[%s1] sm:$0xff]
    %v47 = vld [vmem:[%s1 + $0x8] sm:$0xff]
    %v48 = vld [vmem:[%s1 + $0x10] sm:$0xff]
    %v49 = vsub.f32 %v43, %v46
    %v50 = vsub.f32 %v44, %v47
    %v51 = vsub.f32 %v45, %v48
    %v52 = vmul.f32 %v49, %v49
    %v53 = vmul.f32 %v50, %v50
    %v54 = vmul.f32 %v51, %v51
    %vm55 = vcmask 15360
    %v56 = vsel %vm55, %v52, 0.0
    %v57 = vsel %vm55, %v53, 0.0
    %v58 = vadd.f32 %v56, %v57
    %v59 = vsel %vm55, %v54, 0.0
    %v60 = vadd.f32 %v58, %v59
    %61 = vadd.xlane.f32.xlu0 %v60
    %v62 = vpop.xlane.xlu0 %61
    %v63 = vrot.slane %v62, 4
    %v64 = vadd.f32 %v62, %v63
    %v65 = vrot.slane %v64, 2
    %v66 = vadd.f32 %v64, %v65
    %v67 = vrot.slane %v66, 1
    %v68 = vadd.f32 %v66, %v67
    %s69 = vtos %v68
    %s70 = smul.f32 %s69, 0.01
    %s71 = sld [smem:[#allocation2 + $0x2]]
    %s72 = sld [smem:[#allocation5 + $0x2]]
    %s73 = ssub.f32 %s71, %s72
    %s74 = smul.f32 %s73, %s73
    %s75 = smul.f32 %s74, 10000.0
    %s76 = sadd.f32 %s70, %s75
    %s77 = scalar_lea.smem [#allocation7], 0
    %78 = sst [smem:[%s77]] %s76
    // Predicated region
    $region26: #{tpu_custom_call.1} parent=1 // pred_check
      _
    $region27: #{tpu_custom_call.1} parent=1 // pred_check_branch
      %80 = sbr.rel (0) target = $region29
    $region28: #{tpu_custom_call.1} parent=1 // pred_region
      %s82 = ssub.s32 16, 16
      %83 = vsyncadd [#allocation3], %s82
      %86 = dma.smem_to_hbm [#allocation7], 16, %s4, [#allocation3]
    $region29: #{tpu_custom_call.1} parent=1 // pred_fallthru
      _
    // Predicated region
    $region30: #{tpu_custom_call.1} parent=1 // pred_check
      _
    $region31: #{tpu_custom_call.1} parent=1 // pred_check_branch
      %88 = sbr.rel (0) target = $region33
    $region32: #{tpu_custom_call.1} parent=1 // pred_region
      %89 = dma.done [#allocation3], 16
    $region33: #{tpu_custom_call.1} parent=1 // pred_fallthru
      _
    %90 = sfence
    %91 = vsyncpa [#allocation3], 1
    %92 = vsyncpa [#allocation4], 1
    %93 = vsyncpa [#allocation6], 1

</llo_original>
